<compile_context>
chip_gen: v5e
topology: v5e:2x2
jax: 0.10.0
libtpu: 0.0.40
codegen_flags: <defaults>
</compile_context>

<pallas_src>
import numpy as np
import jax
import jax.numpy as jnp
from jax import lax
from jax.experimental import pallas as pl
from jax.experimental.pallas import tpu as pltpu


def magic_memory_kernel(keys_ref, xy_ref, bias_ref, idx_ref, dmin_ref):
    nj = pl.program_id(1)
    tn = keys_ref.shape[0]

    @pl.when(nj == 0)
    def _():
        dmin_ref[...] = jnp.full_like(dmin_ref, jnp.inf)
        idx_ref[...] = jnp.zeros_like(idx_ref)

    q = xy_ref[...]                                                   # (tb, Dk_pad) f32
    k = keys_ref[...]                                                 # (tn, Dk_pad) f32
    # Resident full bias row; slice the current N-tile (lane-aligned start).
    bias = bias_ref[:, pl.ds(pl.multiple_of(nj * tn, 128), tn)]       # (1, tn) f32

    # kq[b, n] = <q_b, k_n>; contract last dims of both operands -> MXU, no relayout.
    # f32 path (HIGHEST) keeps the distance faithful to the f32 reference / 0.01 ball.
    kq = lax.dot_general(q, k, dimension_numbers=(((1,), (1,)), ((), ())),
                         preferred_element_type=jnp.float32,
                         precision=lax.Precision.HIGHEST)             # (tb, tn) f32
    d = bias - 2.0 * kq                                               # (tb, tn) f32

    # Tile-local argmin (first occurrence within the tile).
    # TODO(synk): if a bundle dump ever shows XLU as the saturated slot, fuse these two
    # reductions into a single packed min; not needed while the kernel is DMA/MXU bound.
    tb_, tn_ = d.shape
    tile_dmin = jnp.min(d, axis=-1, keepdims=True)                    # (tb, 1) f32
    col = lax.broadcasted_iota(jnp.int32, (tb_, tn_), 1)
    first_idx = jnp.min(jnp.where(d == tile_dmin, col, tn_),
                        axis=-1, keepdims=True)                       # (tb, 1) int32
    global_idx = first_idx + nj * tn_                                 # (tb, 1) int32

    # Online update directly into the resident outputs: strict `<` keeps the earliest
    # tile on exact ties, matching jnp.argmin's first-occurrence semantics.
    better = tile_dmin < dmin_ref[...]                                # (tb, 1) bool
    idx_ref[...] = jnp.where(better, global_idx, idx_ref[...])
    dmin_ref[...] = jnp.minimum(tile_dmin, dmin_ref[...])


def _rup(x, m):
    return (x + m - 1) // m * m


def _tile_defaults(B, N):
    """Per-generation tile sizing (roofline knee + VMEM + megacore)."""
    kind = ""
    try:
        kind = jax.devices()[0].device_kind.lower()
    except Exception:
        pass
    is_v6 = "v6" in kind
    is_v7 = "v7" in kind
    # v6e: knee ~650 FLOP/B and 128 MiB VMEM -> grow tb.  v5e (~240) / v7x (~310,
    # 64 MiB VMEM) -> tb<=256 already sits at balance; bigger buys nothing.
    tb_cap = 512 if is_v6 else 256
    tb = min(_rup(B, 8), tb_cap)
    if is_v7 and tb == _rup(B, 8) and B >= 16:
        # v7x has 2 TensorCores: keep grid dim 0 >= 2 so the "parallel" B axis shards.
        tb = _rup((B + 1) // 2, 8)
    tn = min(_rup(N, 128), 512)
    return tb, tn


def magic_memory_forward(keys, values, pi, X, Y, *, tb=None, tn=None):
    """Pallas implementation of MagicMemory.forward(X, Y)."""
    f32 = jnp.float32

    # ---- wrapper glue: query concat + static permutation of the value table ----
    XY = jnp.concatenate([X, Y], axis=-1).astype(f32)
    keys_f = keys.astype(f32)
    values_perm = values[pi].astype(f32)                              # (N, Dx) f32

    B, Dk = XY.shape
    N = keys_f.shape[0]
    # PyTorch broadcast quirk: query norm is indexed by the KEY index n, so the
    # reference semantics only exist when B == N.  Do not lift this assert.
    assert B == N, "MagicMemory reference broadcasting requires batch == num stored patterns"

    # bias[n] = ||key_n||^2 + ||query_n||^2   (query norm indexed by n — the quirk)
    bias = (jnp.sum(keys_f * keys_f, axis=-1) +
            jnp.sum(XY * XY, axis=-1))[None, :]                       # (1, N) f32

    # ---- tiling & padding ----
    dtb, dtn = _tile_defaults(B, N)
    tb = dtb if tb is None else tb
    tn = dtn if tn is None else tn
    assert tb % 8 == 0 and tn % 128 == 0

    B_pad, N_pad = _rup(B, tb), _rup(N, tn)
    # Keep the contraction a multiple of 256 when Dk is large (2x256^2 MXUs on v6e/v7x),
    # but never inflate a small Dk beyond one 128-lane tile.
    Dk_pad = _rup(Dk, 256) if Dk > 128 else _rup(Dk, 128)

    # Zero-padding the feature dim changes no dot product / norm.  Padded key columns
    # get a huge bias so they can never win the argmin nor trip in_ball.
    keys_p = jnp.zeros((N_pad, Dk_pad), f32).at[:N, :Dk].set(keys_f)
    xy_p = jnp.zeros((B_pad, Dk_pad), f32).at[:B, :Dk].set(XY)
    bias_p = jnp.full((1, N_pad), 1e30, f32).at[:, :N].set(bias)

    grid = (B_pad // tb, N_pad // tn)

    # Explicit scoped-VMEM budget from the double-buffered tiles (matters on v5e's
    # 16 MiB default and v7x's 64 MiB physical VMEM).
    vmem_bytes = 2 * (tn * Dk_pad + tb * Dk_pad) * 4      # keys + query tiles, 2-deep
    vmem_bytes += 2 * N_pad * 4                            # resident bias row
    vmem_bytes += 2 * 2 * tb * 4                           # idx + dmin output blocks
    vmem_limit = int(min(max(4 * vmem_bytes, 16 << 20), 64 << 20))

    idx_p, dmin_p = pl.pallas_call(
        magic_memory_kernel,
        out_shape=(jax.ShapeDtypeStruct((B_pad, 1), jnp.int32),
                   jax.ShapeDtypeStruct((B_pad, 1), f32)),
        grid_spec=pltpu.PrefetchScalarGridSpec(
            num_scalar_prefetch=0,
            grid=grid,
            in_specs=[
                pl.BlockSpec((tn, Dk_pad), lambda bi, ni: (ni, 0)),   # keys tile
                pl.BlockSpec((tb, Dk_pad), lambda bi, ni: (bi, 0)),   # query tile
                pl.BlockSpec((1, N_pad),   lambda bi, ni: (0, 0)),    # full bias row (resident)
            ],
            out_specs=[
                pl.BlockSpec((tb, 1), lambda bi, ni: (bi, 0)),        # running argmin idx
                pl.BlockSpec((tb, 1), lambda bi, ni: (bi, 0)),        # running min distance
            ],
        ),
        compiler_params=pltpu.CompilerParams(
            dimension_semantics=("parallel", "arbitrary"),
            vmem_limit_bytes=vmem_limit),
    )(keys_p, xy_p, bias_p)

    idx = idx_p[:B, 0]                                                # (B,) int32
    in_ball = (dmin_p[:B, :] <= 0.01).astype(f32)                     # (B, 1) f32
    # Exact f32 retrieval as a plain gather (was a bf16 one-hot matmul in-kernel).
    return in_ball * values_perm[idx]


def magic_memory_ref(keys, values, pi, X, Y):
    """Pure-JAX mirror of the PyTorch forward (including its broadcasting quirk)."""
    XY = jnp.concatenate([X, Y], axis=-1)
    norms = jnp.sum(keys ** 2, axis=-1)                       # (N,)
    kq = jnp.einsum('ij,...j->...i', keys, XY)                # (B, N)
    d = norms + jnp.sum(XY ** 2, axis=-1) - 2 * kq            # same broadcast as torch
    in_ball = jnp.any(d <= 0.01, axis=1, keepdims=True)       # (B, 1) bool
    idx = jnp.argmin(d, axis=-1)                              # (B,)
    return in_ball * values[pi[idx]]


if __name__ == "__main__":
    n_item = 8
    N = 8            # number of stored patterns == query batch size (required)

    root = jax.random.PRNGKey(0)
    k_pi, k_noise = jax.random.split(root)

    # Stored patterns: X = [onehot(left), onehot(right)], Y = (left == right)
    left = jnp.arange(N) % n_item
    right = (3 * jnp.arange(N) + 2) % n_item
    eye = jnp.eye(n_item, dtype=jnp.float32)
    Xs = jnp.concatenate([eye[left], eye[right]], axis=-1)          # (8, 16)
    Ys = (left == right).astype(jnp.float32)[:, None]               # (8, 1)

    keys = jnp.concatenate([Xs, Ys], axis=-1)                       # (8, 17)
    values = Xs                                                     # (8, 16)
    pi = jax.random.permutation(k_pi, N)                            # permutation on [N]

    # Queries: the stored patterns, with the last two rows knocked out of the ball.
    noise = 0.3 * jax.random.normal(k_noise, Xs.shape, dtype=jnp.float32)
    noise_mask = (jnp.arange(N) >= N - 2).astype(jnp.float32)[:, None]
    Xq = Xs + noise_mask * noise                                    # (8, 16)
    Yq = Ys                                                         # (8, 1)

    out = magic_memory_forward(keys, values, pi, Xq, Yq)
    out = jax.block_until_ready(out)

    ref = magic_memory_ref(keys, values, pi, Xq, Yq)
    np.testing.assert_allclose(np.asarray(out), np.asarray(ref), atol=1e-5, rtol=1e-5)

    print("KERNEL_OK")
</pallas_src>

<mosaic_0001>
module attributes {stable_mosaic.version = 11 : i64} {
  func.func @magic_memory_kernel(%arg0: i32, %arg1: i32, %arg2: memref<128x128xf32, #tpu.memory_space<vmem>>, %arg3: memref<8x128xf32, #tpu.memory_space<vmem>>, %arg4: memref<1x128xf32, #tpu.memory_space<vmem>>, %arg5: memref<8x1xi32, #tpu.memory_space<vmem>>, %arg6: memref<8x1xf32, #tpu.memory_space<vmem>>) attributes {dimension_semantics = [#tpu.dimension_semantics<parallel>, #tpu.dimension_semantics<arbitrary>], iteration_bounds = array<i64: 1, 1>, scalar_prefetch = 0 : i64, scratch_operands = 0 : i64, tpu.core_type = #tpu.core_type<tc>, window_params = [{transform_indices = @transform_0, window_bounds = array<i64: 128, 128>}, {transform_indices = @transform_1, window_bounds = array<i64: 8, 128>}, {pipeline_mode = #tpu.pipeline_mode<synchronous>, transform_indices = @transform_2, window_bounds = array<i64: 1, 128>}, {transform_indices = @transform_3, window_bounds = array<i64: 8, 1>}, {transform_indices = @transform_4, window_bounds = array<i64: 8, 1>}]} {
    %c0_i32 = arith.constant 0 : i32
    %0 = arith.cmpi eq, %arg1, %c0_i32 : i32
    %1 = arith.extui %0 : i1 to i32
    %c0_i32_0 = arith.constant 0 : i32
    %2 = arith.cmpi ne, %1, %c0_i32_0 : i32
    scf.if %2 {
      %cst_20 = arith.constant 0x7F800000 : f32
      %34 = vector.broadcast %cst_20 : f32 to vector<8x1xf32>
      %c0_21 = arith.constant 0 : index
      %c0_22 = arith.constant 0 : index
      %35 = vector.load %arg6[%c0_21, %c0_22] : memref<8x1xf32, #tpu.memory_space<vmem>>, vector<8x1xf32>
      tpu.vector_store %arg6[%c0_21, %c0_22], %34 {strides = array<i32>} : memref<8x1xf32, #tpu.memory_space<vmem>>, vector<8x1xf32>,
      %c0_i32_23 = arith.constant 0 : i32
      %36 = vector.broadcast %c0_i32_23 : i32 to vector<8x1xi32>
      %c0_24 = arith.constant 0 : index
      %c0_25 = arith.constant 0 : index
      %37 = vector.load %arg5[%c0_24, %c0_25] : memref<8x1xi32, #tpu.memory_space<vmem>>, vector<8x1xi32>
      tpu.vector_store %arg5[%c0_24, %c0_25], %36 {strides = array<i32>} : memref<8x1xi32, #tpu.memory_space<vmem>>, vector<8x1xi32>,
    } else {
    }
    %c0 = arith.constant 0 : index
    %c0_1 = arith.constant 0 : index
    %3 = vector.load %arg3[%c0, %c0_1] : memref<8x128xf32, #tpu.memory_space<vmem>>, vector<8x128xf32>
    %c0_2 = arith.constant 0 : index
    %c0_3 = arith.constant 0 : index
    %4 = vector.load %arg2[%c0_2, %c0_3] : memref<128x128xf32, #tpu.memory_space<vmem>>, vector<128x128xf32>
    %c128_i32 = arith.constant 128 : i32
    %5 = arith.muli %arg1, %c128_i32 : i32
    %6 = tpu.assume_multiple %5, 128 : i32
    %c0_4 = arith.constant 0 : index
    %7 = arith.index_cast %6 : i32 to index
    %8 = vector.load %arg4[%c0_4, %7] : memref<1x128xf32, #tpu.memory_space<vmem>>, vector<1x128xf32>
    %cst = arith.constant dense<0.000000e+00> : vector<8x128xf32>
    %9 = tpu.matmul %3, %4, %cst {dimension_numbers = #tpu.dot_dimension_numbers<[1], [1], [0], [0], [0, 0, 1, 0], [], []>, precision = #tpu.contract_precision<fp32>} : vector<8x128xf32>, vector<128x128xf32>, vector<8x128xf32> -> vector<8x128xf32>
    %cst_5 = arith.constant 2.000000e+00 : f32
    %10 = vector.broadcast %cst_5 : f32 to vector<8x128xf32>
    %11 = arith.mulf %10, %9 : vector<8x128xf32>
    %12 = vector.broadcast %8 : vector<1x128xf32> to vector<8x128xf32>
    %13 = arith.subf %12, %11 : vector<8x128xf32>
    %cst_6 = arith.constant dense<0x7F800000> : vector<8xf32>
    %14 = vector.multi_reduction <minimumf>, %13, %cst_6 [1] : vector<8x128xf32> to vector<8xf32>
    %15 = vector.shape_cast %14 : vector<8xf32> to vector<8x1xf32>
    %16 = tpu.iota {dimensions = array<i32: 1>} : vector<8x128xi32>
    %17 = vector.broadcast %15 : vector<8x1xf32> to vector<8x128xf32>
    %18 = arith.cmpf oeq, %13, %17 : vector<8x128xf32>
    %c128_i32_7 = arith.constant 128 : i32
    %19 = vector.broadcast %c128_i32_7 : i32 to vector<8x128xi32>
    %20 = arith.select %18, %16, %19 : vector<8x128xi1>, vector<8x128xi32>
    %cst_8 = arith.constant dense<2147483647> : vector<8xi32>
    %21 = vector.multi_reduction <minsi>, %20, %cst_8 [1] : vector<8x128xi32> to vector<8xi32>
    %22 = vector.shape_cast %21 : vector<8xi32> to vector<8x1xi32>
    %c128_i32_9 = arith.constant 128 : i32
    %23 = arith.muli %arg1, %c128_i32_9 : i32
    %24 = vector.broadcast %23 : i32 to vector<8x1xi32>
    %25 = arith.addi %22, %24 : vector<8x1xi32>
    %c0_10 = arith.constant 0 : index
    %c0_11 = arith.constant 0 : index
    %26 = vector.load %arg6[%c0_10, %c0_11] : memref<8x1xf32, #tpu.memory_space<vmem>>, vector<8x1xf32>
    %27 = arith.cmpf olt, %15, %26 : vector<8x1xf32>
    %c0_12 = arith.constant 0 : index
    %c0_13 = arith.constant 0 : index
    %28 = vector.load %arg5[%c0_12, %c0_13] : memref<8x1xi32, #tpu.memory_space<vmem>>, vector<8x1xi32>
    %29 = arith.select %27, %25, %28 : vector<8x1xi1>, vector<8x1xi32>
    %c0_14 = arith.constant 0 : index
    %c0_15 = arith.constant 0 : index
    %30 = vector.load %arg5[%c0_14, %c0_15] : memref<8x1xi32, #tpu.memory_space<vmem>>, vector<8x1xi32>
    tpu.vector_store %arg5[%c0_14, %c0_15], %29 {strides = array<i32>} : memref<8x1xi32, #tpu.memory_space<vmem>>, vector<8x1xi32>,
    %c0_16 = arith.constant 0 : index
    %c0_17 = arith.constant 0 : index
    %31 = vector.load %arg6[%c0_16, %c0_17] : memref<8x1xf32, #tpu.memory_space<vmem>>, vector<8x1xf32>
    %32 = arith.minimumf %15, %31 : vector<8x1xf32>
    %c0_18 = arith.constant 0 : index
    %c0_19 = arith.constant 0 : index
    %33 = vector.load %arg6[%c0_18, %c0_19] : memref<8x1xf32, #tpu.memory_space<vmem>>, vector<8x1xf32>
    tpu.vector_store %arg6[%c0_18, %c0_19], %32 {strides = array<i32>} : memref<8x1xf32, #tpu.memory_space<vmem>>, vector<8x1xf32>,
    return
  }
  func.func @transform_0(%arg0: i32, %arg1: i32) -> (i32, i32) {
    %c0_i32 = arith.constant 0 : i32
    %c0_i32_0 = arith.constant 0 : i32
    return %arg1, %c0_i32 : i32, i32
  }
  func.func @transform_1(%arg0: i32, %arg1: i32) -> (i32, i32) {
    %c0_i32 = arith.constant 0 : i32
    %c0_i32_0 = arith.constant 0 : i32
    return %arg0, %c0_i32 : i32, i32
  }
  func.func @transform_2(%arg0: i32, %arg1: i32) -> (i32, i32) {
    %c0_i32 = arith.constant 0 : i32
    %c0_i32_0 = arith.constant 0 : i32
    %c0_i32_1 = arith.constant 0 : i32
    return %c0_i32, %c0_i32_0 : i32, i32
  }
  func.func @transform_3(%arg0: i32, %arg1: i32) -> (i32, i32) {
    %c0_i32 = arith.constant 0 : i32
    %c0_i32_0 = arith.constant 0 : i32
    return %arg0, %c0_i32 : i32, i32
  }
  func.func @transform_4(%arg0: i32, %arg1: i32) -> (i32, i32) {
    %c0_i32 = arith.constant 0 : i32
    %c0_i32_0 = arith.constant 0 : i32
    return %arg0, %c0_i32 : i32, i32
  }
}

</mosaic_0001>

<llo_original>
// kernel: tpu_custom_call.1
$region0: #{tpu_custom_call.1}
  #allocation0 [shape = 'u32[]', space=smem, size = 0x4, offset = 0x4, fixed_abs, tag = 'smem constant byte address 0x4 - core index']
  #allocation1 [shape = 'u32[72,128]{1,0:T(1,128)}', space=vmem, size = 0x9000, scoped, tag = 'internal scratch']
  %s0 = inlined_call_operand.hbm [shape: f32[128,128], index: 0, kind: input, shape index: {}]
  %s1 = inlined_call_operand.hbm [shape: f32[8,128], index: 1, kind: input, shape index: {}]
  %s2 = inlined_call_operand.vmem [shape: f32[1,128], index: 2, kind: input, shape index: {}]
  %s3 = inlined_call_operand.vmem [shape: s32[8,1], index: 3, kind: output, shape index: {0}]
  %s4 = inlined_call_operand.vmem [shape: f32[8,1], index: 4, kind: output, shape index: {1}]
  %5 = xla_tuple %s3, %s4
  %s6 = sld [smem:[#allocation0]]
  $region42: #{tpu_custom_call.1} parent=0
    _
  %s8 = ssub.s32 1, %s6
  %s9 = scalar_select 0, %s8, %s6
  $region1: #{tpu_custom_call.1} parent=0
    #allocation2 [shape = 'u8[65536]{0}', space=vmem, size = 0x10000, scoped, tag = 'input window, operand 0, single buffered']
    #allocation3 [shape = 's32[1]{0}', space=sflag, size = 0x4, scoped, tag = 'scoped memory for tpu_custom_call.1']
    #allocation4 [shape = 'u8[4096]{0}', space=vmem, size = 0x1000, scoped, tag = 'input window, operand 1, single buffered']
    #allocation5 [shape = 's32[1]{0}', space=sflag, size = 0x4, scoped, tag = 'scoped memory for tpu_custom_call.1']
    %10 = vsyncpa [#allocation3], 0
    %11 = vsyncpa [#allocation5], 0
    // Predicated region
    $region2: #{tpu_custom_call.1} parent=1 // pred_check
      _
    $region3: #{tpu_custom_call.1} parent=1 // pred_check_branch
      %13 = sbr.rel (0) target = $region5
    $region4: #{tpu_custom_call.1} parent=1 // pred_region
      %15 = vsyncadd [#allocation3], 0
      %s16 = sshll.u32 %s0, 4
      %s17 = int_to_ptr.hbm [resolvable:$true] %s16
      %s18 = sshll.u32 [#allocation2], 4
      %s19 = int_to_ptr.vmem [resolvable:$true] %s18
      %24 = dma.hbm_to_vmem [thread:$0]  %s17, 2048, %s19, [#allocation3], 128, 128, 8
    $region5: #{tpu_custom_call.1} parent=1 // pred_fallthru
      _
    // Predicated region
    $region6: #{tpu_custom_call.1} parent=1 // pred_check
      _
    $region7: #{tpu_custom_call.1} parent=1 // pred_check_branch
      %26 = sbr.rel (0) target = $region9
    $region8: #{tpu_custom_call.1} parent=1 // pred_region
      %28 = vsyncadd [#allocation5], 0
      %s30 = sshll.u32 %s1, 4
      %s31 = int_to_ptr.hbm [resolvable:$true] %s30
      %s32 = sshll.u32 [#allocation4], 4
      %s33 = int_to_ptr.vmem [resolvable:$true] %s32
      %35 = dma.hbm_to_vmem [thread:$0]  %s31, 128, %s33, [#allocation5]
    $region9: #{tpu_custom_call.1} parent=1 // pred_fallthru
      _
    // Predicated region
    $region10: #{tpu_custom_call.1} parent=1 // pred_check
      _
    $region11: #{tpu_custom_call.1} parent=1 // pred_check_branch
      %37 = sbr.rel (0) target = $region13
    $region12: #{tpu_custom_call.1} parent=1 // pred_region
      _
    $region13: #{tpu_custom_call.1} parent=1 // pred_fallthru
      _
    // Predicated region
    $region14: #{tpu_custom_call.1} parent=1 // pred_check
      _
    $region15: #{tpu_custom_call.1} parent=1 // pred_check_branch
      %39 = sbr.rel (0) target = $region17
    $region16: #{tpu_custom_call.1} parent=1 // pred_region
      %41 = dma.done [#allocation3], 2048
    $region17: #{tpu_custom_call.1} parent=1 // pred_fallthru
      _
    // Predicated region
    $region18: #{tpu_custom_call.1} parent=1 // pred_check
      _
    $region19: #{tpu_custom_call.1} parent=1 // pred_check_branch
      %43 = sbr.rel (0) target = $region21
    $region20: #{tpu_custom_call.1} parent=1 // pred_region
      %45 = dma.done [#allocation5], 128
    $region21: #{tpu_custom_call.1} parent=1 // pred_fallthru
      _
    %p46 = scmp.eq.s32.totalorder 0, 0
    // Predicated region
    $region22: #{tpu_custom_call.1} parent=1 // pred_check
      %p47 = pneg %p46
    $region23: #{tpu_custom_call.1} parent=1 // pred_check_branch
      %49 = sbr.rel (%p47) target = $region25
    $region24: #{tpu_custom_call.1} parent=1 // pred_region
      %vm50 = vcmask 7168
      %51 = vst.msk [vmem:[%s4] sm:$0xff] %vm50, inf
      %52 = vst.msk [vmem:[%s3] sm:$0xff] %vm50, 0
    $region25: #{tpu_custom_call.1} parent=1 // pred_fallthru
      _
    %v53 = vld [vmem:[#allocation4] sm:$0xff]
    %v54 = vld [vmem:[#allocation2] sm:$0xff]
    %v55 = vld [vmem:[#allocation2 + $0x8] sm:$0xff]
    %v56 = vld [vmem:[#allocation2 + $0x10] sm:$0xff]
    %v57 = vld [vmem:[#allocation2 + $0x18] sm:$0xff]
    %v58 = vld [vmem:[#allocation2 + $0x20] sm:$0xff]
    %v59 = vld [vmem:[#allocation2 + $0x28] sm:$0xff]
    %v60 = vld [vmem:[#allocation2 + $0x30] sm:$0xff]
    %v61 = vld [vmem:[#allocation2 + $0x38] sm:$0xff]
    %v62 = vld [vmem:[#allocation2 + $0x40] sm:$0xff]
    %v63 = vld [vmem:[#allocation2 + $0x48] sm:$0xff]
    %v64 = vld [vmem:[#allocation2 + $0x50] sm:$0xff]
    %v65 = vld [vmem:[#allocation2 + $0x58] sm:$0xff]
    %v66 = vld [vmem:[#allocation2 + $0x60] sm:$0xff]
    %v67 = vld [vmem:[#allocation2 + $0x68] sm:$0xff]
    %v68 = vld [vmem:[#allocation2 + $0x70] sm:$0xff]
    %v69 = vld [vmem:[#allocation2 + $0x78] sm:$0xff]
    %s70 = smul.u32 0, 128
    %s71 = sshra.s32 %s70, 7
    %s72 = sand.u32 %s70, 127
    %s73 = scalar_lea.vmem %s2, %s71
    %v74 = vld [vmem:[%s73] sm:$0x1]
    %v75 = vand.u32 %v69, 4294901760
    %76 = vmatpush.xpose.msra.mxu0 %v75
    %v77 = vand.u32 %v68, 4294901760
    %78 = vmatpush.xpose.msra.mxu0 %v77
    %v79 = vand.u32 %v67, 4294901760
    %80 = vmatpush.xpose.msra.mxu0 %v79
    %v81 = vand.u32 %v66, 4294901760
    %82 = vmatpush.xpose.msra.mxu0 %v81
    %v83 = vand.u32 %v65, 4294901760
    %84 = vmatpush.xpose.msra.mxu0 %v83
    %v85 = vand.u32 %v64, 4294901760
    %86 = vmatpush.xpose.msra.mxu0 %v85
    %v87 = vand.u32 %v63, 4294901760
    %88 = vmatpush.xpose.msra.mxu0 %v87
    %v89 = vand.u32 %v62, 4294901760
    %90 = vmatpush.xpose.msra.mxu0 %v89
    %v91 = vand.u32 %v61, 4294901760
    %92 = vmatpush.xpose.msra.mxu0 %v91
    %v93 = vand.u32 %v60, 4294901760
    %94 = vmatpush.xpose.msra.mxu0 %v93
    %v95 = vand.u32 %v59, 4294901760
    %96 = vmatpush.xpose.msra.mxu0 %v95
    %v97 = vand.u32 %v58, 4294901760
    %98 = vmatpush.xpose.msra.mxu0 %v97
    %v99 = vand.u32 %v57, 4294901760
    %100 = vmatpush.xpose.msra.mxu0 %v99
    %v101 = vand.u32 %v56, 4294901760
    %102 = vmatpush.xpose.msra.mxu0 %v101
    %v103 = vand.u32 %v55, 4294901760
    %104 = vmatpush.xpose.msra.mxu0 %v103
    %v105 = vand.u32 %v54, 4294901760
    %106 = vmatpush.xpose.msra.mxu0 %v105
    %v107 = vand.u32 %v53, 4294901760
    %v108 = vsub.f32 %v53, %v107
    %v109 = vand.u32 %v108, 4294901760
    %v110 = vsub.f32 %v108, %v109
    %v111 = vand.u32 %v110, 4294901760
    %112 = vmatmul.f32.gmra.mxu0 %v111
    %v113 = vpop.f32.mrf.mxu0
    %v114 = vadd.f32 0.0, %v113
    %115 = vdwg.mxu0
    %v116 = vand.u32 %v69, 4294901760
    %v117 = vsub.f32 %v69, %v116
    %v118 = vand.u32 %v117, 4294901760
    %v119 = vsub.f32 %v117, %v118
    %v120 = vand.u32 %v119, 4294901760
    %121 = vmatpush.xpose.msra.mxu0 %v120
    %v122 = vand.u32 %v68, 4294901760
    %v123 = vsub.f32 %v68, %v122
    %v124 = vand.u32 %v123, 4294901760
    %v125 = vsub.f32 %v123, %v124
    %v126 = vand.u32 %v125, 4294901760
    %127 = vmatpush.xpose.msra.mxu0 %v126
    %v128 = vand.u32 %v67, 4294901760
    %v129 = vsub.f32 %v67, %v128
    %v130 = vand.u32 %v129, 4294901760
    %v131 = vsub.f32 %v129, %v130
    %v132 = vand.u32 %v131, 4294901760
    %133 = vmatpush.xpose.msra.mxu0 %v132
    %v134 = vand.u32 %v66, 4294901760
    %v135 = vsub.f32 %v66, %v134
    %v136 = vand.u32 %v135, 4294901760
    %v137 = vsub.f32 %v135, %v136
    %v138 = vand.u32 %v137, 4294901760
    %139 = vmatpush.xpose.msra.mxu0 %v138
    %v140 = vand.u32 %v65, 4294901760
    %v141 = vsub.f32 %v65, %v140
    %v142 = vand.u32 %v141, 4294901760
    %v143 = vsub.f32 %v141, %v142
    %v144 = vand.u32 %v143, 4294901760
    %145 = vmatpush.xpose.msra.mxu0 %v144
    %v146 = vand.u32 %v64, 4294901760
    %v147 = vsub.f32 %v64, %v146
    %v148 = vand.u32 %v147, 4294901760
    %v149 = vsub.f32 %v147, %v148
    %v150 = vand.u32 %v149, 4294901760
    %151 = vmatpush.xpose.msra.mxu0 %v150
    %v152 = vand.u32 %v63, 4294901760
    %v153 = vsub.f32 %v63, %v152
    %v154 = vand.u32 %v153, 4294901760
    %v155 = vsub.f32 %v153, %v154
    %v156 = vand.u32 %v155, 4294901760
    %157 = vmatpush.xpose.msra.mxu0 %v156
    %v158 = vand.u32 %v62, 4294901760
    %v159 = vsub.f32 %v62, %v158
    %v160 = vand.u32 %v159, 4294901760
    %v161 = vsub.f32 %v159, %v160
    %v162 = vand.u32 %v161, 4294901760
    %163 = vmatpush.xpose.msra.mxu0 %v162
    %v164 = vand.u32 %v61, 4294901760
    %v165 = vsub.f32 %v61, %v164
    %v166 = vand.u32 %v165, 4294901760
    %v167 = vsub.f32 %v165, %v166
    %v168 = vand.u32 %v167, 4294901760
    %169 = vmatpush.xpose.msra.mxu0 %v168
    %v170 = vand.u32 %v60, 4294901760
    %v171 = vsub.f32 %v60, %v170
    %v172 = vand.u32 %v171, 4294901760
    %v173 = vsub.f32 %v171, %v172
    %v174 = vand.u32 %v173, 4294901760
    %175 = vmatpush.xpose.msra.mxu0 %v174
    %v176 = vand.u32 %v59, 4294901760
    %v177 = vsub.f32 %v59, %v176
    %v178 = vand.u32 %v177, 4294901760
    %v179 = vsub.f32 %v177, %v178
    %v180 = vand.u32 %v179, 4294901760
    %181 = vmatpush.xpose.msra.mxu0 %v180
    %v182 = vand.u32 %v58, 4294901760
    %v183 = vsub.f32 %v58, %v182
    %v184 = vand.u32 %v183, 4294901760
    %v185 = vsub.f32 %v183, %v184
    %v186 = vand.u32 %v185, 4294901760
    %187 = vmatpush.xpose.msra.mxu0 %v186
    %v188 = vand.u32 %v57, 4294901760
    %v189 = vsub.f32 %v57, %v188
    %v190 = vand.u32 %v189, 4294901760
    %v191 = vsub.f32 %v189, %v190
    %v192 = vand.u32 %v191, 4294901760
    %193 = vmatpush.xpose.msra.mxu0 %v192
    %v194 = vand.u32 %v56, 4294901760
    %v195 = vsub.f32 %v56, %v194
    %v196 = vand.u32 %v195, 4294901760
    %v197 = vsub.f32 %v195, %v196
    %v198 = vand.u32 %v197, 4294901760
    %199 = vmatpush.xpose.msra.mxu0 %v198
    %v200 = vand.u32 %v55, 4294901760
    %v201 = vsub.f32 %v55, %v200
    %v202 = vand.u32 %v201, 4294901760
    %v203 = vsub.f32 %v201, %v202
    %v204 = vand.u32 %v203, 4294901760
    %205 = vmatpush.xpose.msra.mxu0 %v204
    %v206 = vand.u32 %v54, 4294901760
    %v207 = vsub.f32 %v54, %v206
    %v208 = vand.u32 %v207, 4294901760
    %v209 = vsub.f32 %v207, %v208
    %v210 = vand.u32 %v209, 4294901760
    %211 = vmatpush.xpose.msra.mxu0 %v210
    %v212 = vand.u32 %v53, 4294901760
    %213 = vmatmul.f32.gmra.mxu0 %v212
    %v214 = vpop.f32.mrf.mxu0
    %v215 = vadd.f32 %v114, %v214
    %216 = vdwg.mxu0
    %v217 = vand.u32 %v69, 4294901760
    %v218 = vsub.f32 %v69, %v217
    %219 = vmatpush.xpose.msra.mxu0 %v218
    %v220 = vand.u32 %v68, 4294901760
    %v221 = vsub.f32 %v68, %v220
    %222 = vmatpush.xpose.msra.mxu0 %v221
    %v223 = vand.u32 %v67, 4294901760
    %v224 = vsub.f32 %v67, %v223
    %225 = vmatpush.xpose.msra.mxu0 %v224
    %v226 = vand.u32 %v66, 4294901760
    %v227 = vsub.f32 %v66, %v226
    %228 = vmatpush.xpose.msra.mxu0 %v227
    %v229 = vand.u32 %v65, 4294901760
    %v230 = vsub.f32 %v65, %v229
    %231 = vmatpush.xpose.msra.mxu0 %v230
    %v232 = vand.u32 %v64, 4294901760
    %v233 = vsub.f32 %v64, %v232
    %234 = vmatpush.xpose.msra.mxu0 %v233
    %v235 = vand.u32 %v63, 4294901760
    %v236 = vsub.f32 %v63, %v235
    %237 = vmatpush.xpose.msra.mxu0 %v236
    %v238 = vand.u32 %v62, 4294901760
    %v239 = vsub.f32 %v62, %v238
    %240 = vmatpush.xpose.msra.mxu0 %v239
    %v241 = vand.u32 %v61, 4294901760
    %v242 = vsub.f32 %v61, %v241
    %243 = vmatpush.xpose.msra.mxu0 %v242
    %v244 = vand.u32 %v60, 4294901760
    %v245 = vsub.f32 %v60, %v244
    %246 = vmatpush.xpose.msra.mxu0 %v245
    %v247 = vand.u32 %v59, 4294901760
    %v248 = vsub.f32 %v59, %v247
    %249 = vmatpush.xpose.msra.mxu0 %v248
    %v250 = vand.u32 %v58, 4294901760
    %v251 = vsub.f32 %v58, %v250
    %252 = vmatpush.xpose.msra.mxu0 %v251
    %v253 = vand.u32 %v57, 4294901760
    %v254 = vsub.f32 %v57, %v253
    %255 = vmatpush.xpose.msra.mxu0 %v254
    %v256 = vand.u32 %v56, 4294901760
    %v257 = vsub.f32 %v56, %v256
    %258 = vmatpush.xpose.msra.mxu0 %v257
    %v259 = vand.u32 %v55, 4294901760
    %v260 = vsub.f32 %v55, %v259
    %261 = vmatpush.xpose.msra.mxu0 %v260
    %v262 = vand.u32 %v54, 4294901760
    %v263 = vsub.f32 %v54, %v262
    %264 = vmatpush.xpose.msra.mxu0 %v263
    %v265 = vand.u32 %v53, 4294901760
    %v266 = vsub.f32 %v53, %v265
    %267 = vmatmul.f32.gmra.mxu0 %v266
    %v268 = vpop.f32.mrf.mxu0
    %v269 = vadd.f32 %v215, %v268
    %270 = vdwg.mxu0
    %v271 = vand.u32 %v69, 4294901760
    %272 = vmatpush.xpose.msra.mxu0 %v271
    %v273 = vand.u32 %v68, 4294901760
    %274 = vmatpush.xpose.msra.mxu0 %v273
    %v275 = vand.u32 %v67, 4294901760
    %276 = vmatpush.xpose.msra.mxu0 %v275
    %v277 = vand.u32 %v66, 4294901760
    %278 = vmatpush.xpose.msra.mxu0 %v277
    %v279 = vand.u32 %v65, 4294901760
    %280 = vmatpush.xpose.msra.mxu0 %v279
    %v281 = vand.u32 %v64, 4294901760
    %282 = vmatpush.xpose.msra.mxu0 %v281
    %v283 = vand.u32 %v63, 4294901760
    %284 = vmatpush.xpose.msra.mxu0 %v283
    %v285 = vand.u32 %v62, 4294901760
    %286 = vmatpush.xpose.msra.mxu0 %v285
    %v287 = vand.u32 %v61, 4294901760
    %288 = vmatpush.xpose.msra.mxu0 %v287
    %v289 = vand.u32 %v60, 4294901760
    %290 = vmatpush.xpose.msra.mxu0 %v289
    %v291 = vand.u32 %v59, 4294901760
    %292 = vmatpush.xpose.msra.mxu0 %v291
    %v293 = vand.u32 %v58, 4294901760
    %294 = vmatpush.xpose.msra.mxu0 %v293
    %v295 = vand.u32 %v57, 4294901760
    %296 = vmatpush.xpose.msra.mxu0 %v295
    %v297 = vand.u32 %v56, 4294901760
    %298 = vmatpush.xpose.msra.mxu0 %v297
    %v299 = vand.u32 %v55, 4294901760
    %300 = vmatpush.xpose.msra.mxu0 %v299
    %v301 = vand.u32 %v54, 4294901760
    %302 = vmatpush.xpose.msra.mxu0 %v301
    %v303 = vand.u32 %v53, 4294901760
    %v304 = vsub.f32 %v53, %v303
    %v305 = vand.u32 %v304, 4294901760
    %306 = vmatmul.f32.gmra.mxu0 %v305
    %v307 = vpop.f32.mrf.mxu0
    %v308 = vadd.f32 %v269, %v307
    %309 = vdwg.mxu0
    %v310 = vand.u32 %v69, 4294901760
    %v311 = vsub.f32 %v69, %v310
    %v312 = vand.u32 %v311, 4294901760
    %313 = vmatpush.xpose.msra.mxu0 %v312
    %v314 = vand.u32 %v68, 4294901760
    %v315 = vsub.f32 %v68, %v314
    %v316 = vand.u32 %v315, 4294901760
    %317 = vmatpush.xpose.msra.mxu0 %v316
    %v318 = vand.u32 %v67, 4294901760
    %v319 = vsub.f32 %v67, %v318
    %v320 = vand.u32 %v319, 4294901760
    %321 = vmatpush.xpose.msra.mxu0 %v320
    %v322 = vand.u32 %v66, 4294901760
    %v323 = vsub.f32 %v66, %v322
    %v324 = vand.u32 %v323, 4294901760
    %325 = vmatpush.xpose.msra.mxu0 %v324
    %v326 = vand.u32 %v65, 4294901760
    %v327 = vsub.f32 %v65, %v326
    %v328 = vand.u32 %v327, 4294901760
    %329 = vmatpush.xpose.msra.mxu0 %v328
    %v330 = vand.u32 %v64, 4294901760
    %v331 = vsub.f32 %v64, %v330
    %v332 = vand.u32 %v331, 4294901760
    %333 = vmatpush.xpose.msra.mxu0 %v332
    %v334 = vand.u32 %v63, 4294901760
    %v335 = vsub.f32 %v63, %v334
    %v336 = vand.u32 %v335, 4294901760
    %337 = vmatpush.xpose.msra.mxu0 %v336
    %v338 = vand.u32 %v62, 4294901760
    %v339 = vsub.f32 %v62, %v338
    %v340 = vand.u32 %v339, 4294901760
    %341 = vmatpush.xpose.msra.mxu0 %v340
    %v342 = vand.u32 %v61, 4294901760
    %v343 = vsub.f32 %v61, %v342
    %v344 = vand.u32 %v343, 4294901760
    %345 = vmatpush.xpose.msra.mxu0 %v344
    %v346 = vand.u32 %v60, 4294901760
    %v347 = vsub.f32 %v60, %v346
    %v348 = vand.u32 %v347, 4294901760
    %349 = vmatpush.xpose.msra.mxu0 %v348
    %v350 = vand.u32 %v59, 4294901760
    %v351 = vsub.f32 %v59, %v350
    %v352 = vand.u32 %v351, 4294901760
    %353 = vmatpush.xpose.msra.mxu0 %v352
    %v354 = vand.u32 %v58, 4294901760
    %v355 = vsub.f32 %v58, %v354
    %v356 = vand.u32 %v355, 4294901760
    %357 = vmatpush.xpose.msra.mxu0 %v356
    %v358 = vand.u32 %v57, 4294901760
    %v359 = vsub.f32 %v57, %v358
    %v360 = vand.u32 %v359, 4294901760
    %361 = vmatpush.xpose.msra.mxu0 %v360
    %v362 = vand.u32 %v56, 4294901760
    %v363 = vsub.f32 %v56, %v362
    %v364 = vand.u32 %v363, 4294901760
    %365 = vmatpush.xpose.msra.mxu0 %v364
    %v366 = vand.u32 %v55, 4294901760
    %v367 = vsub.f32 %v55, %v366
    %v368 = vand.u32 %v367, 4294901760
    %369 = vmatpush.xpose.msra.mxu0 %v368
    %v370 = vand.u32 %v54, 4294901760
    %v371 = vsub.f32 %v54, %v370
    %v372 = vand.u32 %v371, 4294901760
    %373 = vmatpush.xpose.msra.mxu0 %v372
    %v374 = vand.u32 %v53, 4294901760
    %375 = vmatmul.f32.gmra.mxu0 %v374
    %v376 = vpop.f32.mrf.mxu0
    %v377 = vadd.f32 %v308, %v376
    %378 = vdwg.mxu0
    %v379 = vand.u32 %v69, 4294901760
    %380 = vmatpush.xpose.msra.mxu0 %v379
    %v381 = vand.u32 %v68, 4294901760
    %382 = vmatpush.xpose.msra.mxu0 %v381
    %v383 = vand.u32 %v67, 4294901760
    %384 = vmatpush.xpose.msra.mxu0 %v383
    %v385 = vand.u32 %v66, 4294901760
    %386 = vmatpush.xpose.msra.mxu0 %v385
    %v387 = vand.u32 %v65, 4294901760
    %388 = vmatpush.xpose.msra.mxu0 %v387
    %v389 = vand.u32 %v64, 4294901760
    %390 = vmatpush.xpose.msra.mxu0 %v389
    %v391 = vand.u32 %v63, 4294901760
    %392 = vmatpush.xpose.msra.mxu0 %v391
    %v393 = vand.u32 %v62, 4294901760
    %394 = vmatpush.xpose.msra.mxu0 %v393
    %v395 = vand.u32 %v61, 4294901760
    %396 = vmatpush.xpose.msra.mxu0 %v395
    %v397 = vand.u32 %v60, 4294901760
    %398 = vmatpush.xpose.msra.mxu0 %v397
    %v399 = vand.u32 %v59, 4294901760
    %400 = vmatpush.xpose.msra.mxu0 %v399
    %v401 = vand.u32 %v58, 4294901760
    %402 = vmatpush.xpose.msra.mxu0 %v401
    %v403 = vand.u32 %v57, 4294901760
    %404 = vmatpush.xpose.msra.mxu0 %v403
    %v405 = vand.u32 %v56, 4294901760
    %406 = vmatpush.xpose.msra.mxu0 %v405
    %v407 = vand.u32 %v55, 4294901760
    %408 = vmatpush.xpose.msra.mxu0 %v407
    %v409 = vand.u32 %v54, 4294901760
    %410 = vmatpush.xpose.msra.mxu0 %v409
    %v411 = vand.u32 %v53, 4294901760
    %412 = vmatmul.f32.gmra.mxu0 %v411
    %v413 = vpop.f32.mrf.mxu0
    %v414 = vadd.f32 %v377, %v413
    %415 = vdwg.mxu0
    %v416 = vmul.f32 %v414, 2.0
    %v418 = vperm.slane %v74, 0
    %v420 = vsub.f32 %v418, %v416
    %421 = vmin.xlane.f32.xlu0 %v420
    %v422 = vpop.xlane.xlu0 %421
    %v423 = vlaneseq
    %v424 = vand.u32 %v423, 127
    %vm425 = vcmp.eq.f32.partialorder %v420, %v422
    %v426 = vsel %vm425, %v424, 128
    %v427 = vand.u32 %v426, 65535
    %v428 = vshra.s32 %v426, 16
    %v429 = vcvt.s32.f32 %v427
    %v430 = vcvt.s32.f32 %v428
    %431 = vmin.xlane.f32.xlu0 %v430
    %v432 = vpop.xlane.xlu0 %431
    %vm433 = vcmp.eq.f32.partialorder %v430, %v432
    %v434 = vsel %vm433, %v429, inf
    %435 = vmin.xlane.f32.xlu0 %v434
    %v436 = vpop.xlane.xlu0 %435
    %v437 = vcvt.f32.s32 %v436
    %v438 = vcvt.f32.s32 %v432
    %v439 = vshll.u32 %v438, 16
    %v440 = vadd.s32 %v439, %v437
    %v441 = vstv %s70
    %v442 = vadd.s32 %v440, %v441
    %v443 = vld [vmem:[%s4] sm:$0xff]
    %vm444 = vcmp.lt.f32.partialorder %v422, %v443
    %v445 = vld [vmem:[%s3] sm:$0xff]
    %v446 = vsel %vm444, %v442, %v445
    %vm447 = vcmask 7168
    %448 = vst.msk [vmem:[%s3] sm:$0xff] %vm447, %v446
    %v449 = vld [vmem:[%s4] sm:$0xff]
    %v450 = vmin.f32 %v422, %v449
    %451 = vst.msk [vmem:[%s4] sm:$0xff] %vm447, %v450
    // Predicated region
    $region26: #{tpu_custom_call.1} parent=1 // pred_check
      _
    $region27: #{tpu_custom_call.1} parent=1 // pred_check_branch
      %453 = sbr.rel (0) target = $region29
    $region28: #{tpu_custom_call.1} parent=1 // pred_region
      _
    $region29: #{tpu_custom_call.1} parent=1 // pred_fallthru
      _
    // Predicated region
    $region30: #{tpu_custom_call.1} parent=1 // pred_check
      _
    $region31: #{tpu_custom_call.1} parent=1 // pred_check_branch
      %455 = sbr.rel (0) target = $region33
    $region32: #{tpu_custom_call.1} parent=1 // pred_region
      _
    $region33: #{tpu_custom_call.1} parent=1 // pred_fallthru
      _
    // Predicated region
    $region34: #{tpu_custom_call.1} parent=1 // pred_check
      _
    $region35: #{tpu_custom_call.1} parent=1 // pred_check_branch
      %457 = sbr.rel (0) target = $region37
    $region36: #{tpu_custom_call.1} parent=1 // pred_region
      _
    $region37: #{tpu_custom_call.1} parent=1 // pred_fallthru
      _
    // Predicated region
    $region38: #{tpu_custom_call.1} parent=1 // pred_check
      _
    $region39: #{tpu_custom_call.1} parent=1 // pred_check_branch
      %459 = sbr.rel (0) target = $region41
    $region40: #{tpu_custom_call.1} parent=1 // pred_region
      _
    $region41: #{tpu_custom_call.1} parent=1 // pred_fallthru
      _
    %460 = vsyncpa [#allocation3], 1
    %461 = vsyncpa [#allocation5], 1

</llo_original>
